<compile_context>
chip_gen: v7x
topology: tpu7x:2x2x1
jax: 0.10.0
libtpu: 0.0.40
codegen_flags: <defaults>
</compile_context>

<pallas_src>
import jax
import jax.numpy as jnp
from jax import lax
from jax.experimental import pallas as pl
from jax.experimental.pallas import tpu as pltpu


def _self_seq_atten_kernel(h_ref, mask_ref, out_ref, alpha_ref):
    # h_ref:     (Bt, S, H)  this step's batch tile of hidden states
    # mask_ref:  (Bt, 1, S)  per-batch key mask (lane-dense)
    # out_ref:   (Bt, S, H)  alpha_seq rows for this batch tile
    # alpha_ref: (Bt, S, S)  attention weights for this batch tile
    hb = h_ref[...].astype(jnp.bfloat16)          # bf16 MXU operands, f32 acc
    m = mask_ref[...].astype(jnp.float32)         # (Bt, 1, S)

    # alpha = h_b @ h_b^T  (batched; contraction on hidden, no .T materialized)
    scores = jnp.einsum("bqh,bkh->bqk", hb, hb,
                        preferred_element_type=jnp.float32)   # (Bt, S, S)

    # masked_fill_(eye, 0.0): zero the diagonal of the logits.
    row = lax.broadcasted_iota(jnp.int32, scores.shape, 1)
    col = lax.broadcasted_iota(jnp.int32, scores.shape, 2)
    scores = jnp.where(row == col, jnp.float32(0.0), scores)

    # masked_softmax along the key axis: x*m -> exp(x - max) -> *m -> /(sum+1e-6)
    x = scores * m
    e = jnp.exp(x - jnp.max(x, axis=-1, keepdims=True)) * m
    inv = pl.reciprocal(jnp.sum(e, axis=-1, keepdims=True) + 1e-6, approx=True)
    sm = e * inv                                   # (Bt, S, S)

    alpha_ref[...] = sm.astype(alpha_ref.dtype)

    # alpha_seq_b = alpha_b @ h_b   (bf16 operands, f32 accumulation)
    out_ref[...] = jnp.einsum("bqk,bkh->bqh", sm.astype(jnp.bfloat16), hb,
                              preferred_element_type=jnp.float32
                              ).astype(out_ref.dtype)


def _per_batch_vmem_bytes(S, H):
    """VMEM bytes per batch element, including pipeline double-buffers,
    the f32 (S,S) softmax intermediates and the bf16 MXU operand copies."""
    f32, bf16 = 4, 2
    pipelined = 2 * (2 * S * H * f32 + S * S * f32 + S * f32)  # h/out/alpha/mask, 2-deep
    intermediates = 4 * S * S * f32                            # scores, x, e, sm
    casts = S * H * bf16 + S * S * bf16                        # bf16 copies for MXU
    return pipelined + intermediates + casts


def self_seq_atten(h, h_mask):
    """h: (seq_len, batch, hidden), h_mask: (batch, seq_len).

    Returns (alpha_seq, alpha):
      alpha_seq: (seq_len, batch, hidden) float32
      alpha:     (batch, seq_len, seq_len) float32
    """
    S, B, H = h.shape
    # One streaming relayout pass so the kernel sees contiguous (S, H) slabs.
    h_bsh = jnp.transpose(h.astype(jnp.float32), (1, 0, 2))       # (B, S, H)
    mask3 = h_mask.astype(jnp.float32).reshape(B, 1, S)           # (B, 1, S)

    # --- choose how many batches to fold per grid step -----------------------
    per_batch = _per_batch_vmem_bytes(S, H)
    budget = 12 << 20                         # stay inside every default scope
    bt = 1
    for d in sorted((d for d in range(1, B + 1) if B % d == 0), reverse=True):
        steps = B // d
        # keep >=2 grid steps when possible (pipeline overlap + v7x dual core)
        if d * per_batch <= budget and (steps >= 2 or B == 1):
            bt = d
            break
    n_steps = B // bt

    # --- VMEM limit: only raise when needed; smallest default is 16 MiB (v5e)
    vmem_needed = bt * per_batch + (1 << 20)
    vmem_limit = None
    if vmem_needed > (14 << 20):
        vmem_limit = min(vmem_needed + (vmem_needed >> 2), 60 << 20)

    out_shapes = (
        jax.ShapeDtypeStruct((B, S, H), jnp.float32),   # alpha_seq (batch-major)
        jax.ShapeDtypeStruct((B, S, S), jnp.float32),   # alpha
    )

    grid_spec = pltpu.PrefetchScalarGridSpec(
        num_scalar_prefetch=0,
        grid=(n_steps,),
        in_specs=[
            pl.BlockSpec((bt, S, H), lambda b: (b, 0, 0)),   # h (contiguous slab)
            pl.BlockSpec((bt, 1, S), lambda b: (b, 0, 0)),   # mask
        ],
        out_specs=[
            pl.BlockSpec((bt, S, H), lambda b: (b, 0, 0)),   # alpha_seq (B,S,H)
            pl.BlockSpec((bt, S, S), lambda b: (b, 0, 0)),   # alpha
        ],
    )

    out_bsh, alpha = pl.pallas_call(
        _self_seq_atten_kernel,
        out_shape=out_shapes,
        grid_spec=grid_spec,
        compiler_params=pltpu.CompilerParams(
            dimension_semantics=("parallel",),
            vmem_limit_bytes=vmem_limit),
    )(h_bsh, mask3)

    alpha_seq = jnp.transpose(out_bsh, (1, 0, 2))               # back to (S, B, H)
    return alpha_seq, alpha


def _reference(h, h_mask):
    """Pure-JAX reference mirroring the PyTorch module.

    Matmul operands are cast to bf16 (f32 accumulation) to mirror the kernel's
    MXU precision; all elementwise math stays f32."""
    hb = jnp.transpose(h, (1, 0, 2)).astype(jnp.bfloat16)        # (B, S, H)
    B, S, _ = hb.shape
    alpha = jnp.einsum("bsh,bth->bst", hb, hb,
                       preferred_element_type=jnp.float32)
    eye = jnp.eye(S, dtype=bool)[None]
    alpha = jnp.where(eye, 0.0, alpha)
    m = h_mask.astype(jnp.float32)[:, None, :]                   # (B, 1, S)
    x = alpha * m
    e = jnp.exp(x - jnp.max(x, axis=2, keepdims=True)) * m
    alpha = e / (jnp.sum(e, axis=2, keepdims=True) + 1e-6)
    out = jnp.einsum("bst,bth->bsh", alpha.astype(jnp.bfloat16), hb,
                     preferred_element_type=jnp.float32)
    return jnp.transpose(out, (1, 0, 2)), alpha


if __name__ == "__main__":
    key = jax.random.PRNGKey(0)
    S, B, H = 16, 2, 32
    h = jax.random.normal(key, (S, B, H), dtype=jnp.float32)

    # mask: batch 0 fully valid, batch 1 has the last 5 positions padded out
    h_mask = jnp.ones((B, S), dtype=jnp.float32)
    h_mask = h_mask.at[1, S - 5:].set(0.0)

    alpha_seq, alpha = self_seq_atten(h, h_mask)
    jax.block_until_ready((alpha_seq, alpha))

    ref_seq, ref_alpha = _reference(h, h_mask)
    assert alpha_seq.shape == (S, B, H)
    assert alpha.shape == (B, S, S)
    # Tolerance accounts for bf16 MXU operands + approximate reciprocal.
    assert jnp.allclose(alpha, ref_alpha, atol=2e-2, rtol=2e-2), \
        float(jnp.max(jnp.abs(alpha - ref_alpha)))
    assert jnp.allclose(alpha_seq, ref_seq, atol=2e-2, rtol=2e-2), \
        float(jnp.max(jnp.abs(alpha_seq - ref_seq)))

    print("KERNEL_OK")
</pallas_src>

<mosaic_0001>
module attributes {stable_mosaic.version = 11 : i64} {
  func.func @_self_seq_atten_kernel(%arg0: i32, %arg1: memref<1x16x32xf32, #tpu.memory_space<vmem>>, %arg2: memref<1x1x16xf32, #tpu.memory_space<vmem>>, %arg3: memref<1x16x32xf32, #tpu.memory_space<vmem>>, %arg4: memref<1x16x16xf32, #tpu.memory_space<vmem>>) attributes {dimension_semantics = [#tpu.dimension_semantics<parallel>], iteration_bounds = array<i64: 2>, scalar_prefetch = 0 : i64, scratch_operands = 0 : i64, tpu.core_type = #tpu.core_type<tc>, window_params = [{transform_indices = @transform_0, window_bounds = array<i64: 1, 16, 32>}, {transform_indices = @transform_1, window_bounds = array<i64: 1, 1, 16>}, {transform_indices = @transform_2, window_bounds = array<i64: 1, 16, 32>}, {transform_indices = @transform_3, window_bounds = array<i64: 1, 16, 16>}]} {
    %c0 = arith.constant 0 : index
    %c0_0 = arith.constant 0 : index
    %c0_1 = arith.constant 0 : index
    %0 = vector.load %arg1[%c0, %c0_0, %c0_1] : memref<1x16x32xf32, #tpu.memory_space<vmem>>, vector<1x16x32xf32>
    %1 = arith.truncf %0 : vector<1x16x32xf32> to vector<1x16x32xbf16>
    %c0_2 = arith.constant 0 : index
    %c0_3 = arith.constant 0 : index
    %c0_4 = arith.constant 0 : index
    %2 = vector.load %arg2[%c0_2, %c0_3, %c0_4] : memref<1x1x16xf32, #tpu.memory_space<vmem>>, vector<1x1x16xf32>
    "tpu.trace_start"() <{level = 10 : i32, message = "bqh,bkh->bqk"}> : () -> ()
    %cst = arith.constant dense<0.000000e+00> : vector<1x16x16xf32>
    %3 = tpu.matmul %1, %1, %cst {dimension_numbers = #tpu.dot_dimension_numbers<[2], [2], [1], [1], [0, 0, 0, 1, 1, 1], [0], [0]>} : vector<1x16x32xbf16>, vector<1x16x32xbf16>, vector<1x16x16xf32> -> vector<1x16x16xf32>
    "tpu.trace_stop"() : () -> ()
    %4 = tpu.iota {dimensions = array<i32: 1>} : vector<1x16x16xi32>
    %5 = tpu.iota {dimensions = array<i32: 2>} : vector<1x16x16xi32>
    %6 = arith.cmpi eq, %4, %5 : vector<1x16x16xi32>
    %cst_5 = arith.constant 0.000000e+00 : f32
    %7 = vector.broadcast %cst_5 : f32 to vector<1x16x16xf32>
    %8 = arith.select %6, %7, %3 : vector<1x16x16xi1>, vector<1x16x16xf32>
    %9 = vector.broadcast %2 : vector<1x1x16xf32> to vector<1x16x16xf32>
    %10 = arith.mulf %8, %9 : vector<1x16x16xf32>
    %cst_6 = arith.constant dense<0xFF800000> : vector<1x16xf32>
    %11 = vector.multi_reduction <maximumf>, %10, %cst_6 [2] : vector<1x16x16xf32> to vector<1x16xf32>
    %12 = vector.shape_cast %11 : vector<1x16xf32> to vector<1x16x1xf32>
    %13 = vector.broadcast %12 : vector<1x16x1xf32> to vector<1x16x16xf32>
    %14 = arith.subf %10, %13 : vector<1x16x16xf32>
    %15 = math.exp %14 : vector<1x16x16xf32>
    %16 = vector.broadcast %2 : vector<1x1x16xf32> to vector<1x16x16xf32>
    %17 = arith.mulf %15, %16 : vector<1x16x16xf32>
    %cst_7 = arith.constant dense<0.000000e+00> : vector<1x16xf32>
    %18 = vector.multi_reduction <add>, %17, %cst_7 [2] : vector<1x16x16xf32> to vector<1x16xf32>
    %19 = vector.shape_cast %18 : vector<1x16xf32> to vector<1x16x1xf32>
    %cst_8 = arith.constant 9.99999997E-7 : f32
    %20 = vector.broadcast %cst_8 : f32 to vector<1x16x1xf32>
    %21 = arith.addf %19, %20 : vector<1x16x1xf32>
    %22 = tpu.reciprocal %21 {approx = true} : vector<1x16x1xf32> -> vector<1x16x1xf32>
    %23 = vector.broadcast %22 : vector<1x16x1xf32> to vector<1x16x16xf32>
    %24 = arith.mulf %17, %23 : vector<1x16x16xf32>
    %c0_9 = arith.constant 0 : index
    %c0_10 = arith.constant 0 : index
    %c0_11 = arith.constant 0 : index
    %25 = vector.load %arg4[%c0_9, %c0_10, %c0_11] : memref<1x16x16xf32, #tpu.memory_space<vmem>>, vector<1x16x16xf32>
    tpu.vector_store %arg4[%c0_9, %c0_10, %c0_11], %24 {strides = array<i32>} : memref<1x16x16xf32, #tpu.memory_space<vmem>>, vector<1x16x16xf32>,
    %26 = arith.truncf %24 : vector<1x16x16xf32> to vector<1x16x16xbf16>
    "tpu.trace_start"() <{level = 10 : i32, message = "bqk,bkh->bqh"}> : () -> ()
    %cst_12 = arith.constant dense<0.000000e+00> : vector<1x16x32xf32>
    %27 = tpu.matmul %26, %1, %cst_12 {dimension_numbers = #tpu.dot_dimension_numbers<[2], [1], [1], [2], [0, 0, 0, 1, 1, 2], [0], [0]>} : vector<1x16x16xbf16>, vector<1x16x32xbf16>, vector<1x16x32xf32> -> vector<1x16x32xf32>
    "tpu.trace_stop"() : () -> ()
    %c0_13 = arith.constant 0 : index
    %c0_14 = arith.constant 0 : index
    %c0_15 = arith.constant 0 : index
    %28 = vector.load %arg3[%c0_13, %c0_14, %c0_15] : memref<1x16x32xf32, #tpu.memory_space<vmem>>, vector<1x16x32xf32>
    tpu.vector_store %arg3[%c0_13, %c0_14, %c0_15], %27 {strides = array<i32>} : memref<1x16x32xf32, #tpu.memory_space<vmem>>, vector<1x16x32xf32>,
    return
  }
  func.func @transform_0(%arg0: i32) -> (i32, i32, i32) {
    %c0_i32 = arith.constant 0 : i32
    %c0_i32_0 = arith.constant 0 : i32
    %c0_i32_1 = arith.constant 0 : i32
    return %arg0, %c0_i32, %c0_i32_0 : i32, i32, i32
  }
  func.func @transform_1(%arg0: i32) -> (i32, i32, i32) {
    %c0_i32 = arith.constant 0 : i32
    %c0_i32_0 = arith.constant 0 : i32
    %c0_i32_1 = arith.constant 0 : i32
    return %arg0, %c0_i32, %c0_i32_0 : i32, i32, i32
  }
  func.func @transform_2(%arg0: i32) -> (i32, i32, i32) {
    %c0_i32 = arith.constant 0 : i32
    %c0_i32_0 = arith.constant 0 : i32
    %c0_i32_1 = arith.constant 0 : i32
    return %arg0, %c0_i32, %c0_i32_0 : i32, i32, i32
  }
  func.func @transform_3(%arg0: i32) -> (i32, i32, i32) {
    %c0_i32 = arith.constant 0 : i32
    %c0_i32_0 = arith.constant 0 : i32
    %c0_i32_1 = arith.constant 0 : i32
    return %arg0, %c0_i32, %c0_i32_0 : i32, i32, i32
  }
}

</mosaic_0001>

<llo_original>
// kernel: tpu_custom_call.1
$region0: #{tpu_custom_call.1}
  #allocation0 [shape = 'u32[]', space=smem, size = 0x4, offset = 0x4, fixed_abs, tag = 'smem constant byte address 0x4 - core index']
  #allocation1 [shape = 'u32[144,128]{1,0:T(1,128)}', space=vmem, size = 0x12000, scoped, tag = 'internal scratch']
  %s0 = inlined_call_operand.hbm [shape: f32[2,16,32], index: 0, kind: input, shape index: {}]
  %s1 = inlined_call_operand.vmem [shape: f32[2,1,16], index: 1, kind: input, shape index: {}]
  %s2 = inlined_call_operand.hbm [shape: f32[2,16,32], index: 2, kind: output, shape index: {0}]
  %s3 = inlined_call_operand.hbm [shape: f32[2,16,16], index: 3, kind: output, shape index: {1}]
  %4 = xla_tuple %s2, %s3
  %s5 = sld [smem:[#allocation0]]
  $region53: #{tpu_custom_call.1} parent=0
    _
  %s7 = ssub.s32 1, %s5
  %s8 = scalar_select 0, %s7, %s5
  $region1: #{tpu_custom_call.1} parent=0
    #allocation2 [shape = 'u8[16384]{0}', space=vmem, size = 0x4000, scoped, tag = 'input window, operand 0']
    #allocation3 [shape = 's32[2]{0}', space=sflag, size = 0x8, scoped, tag = 'scoped memory for tpu_custom_call.1']
    #allocation4 [shape = 's32[2]{0}', space=sflag, size = 0x8, scoped, tag = 'scoped memory for tpu_custom_call.1']
    #allocation5 [shape = 'u8[16384]{0}', space=vmem, size = 0x4000, scoped, tag = 'output window, operand 0']
    #allocation6 [shape = 'u8[16384]{0}', space=vmem, size = 0x4000, scoped, tag = 'output window, operand 1']
    #allocation7 [shape = 's32[2]{0}', space=sflag, size = 0x8, scoped, tag = 'scoped memory for tpu_custom_call.1']
    %9 = vsyncpa [#allocation3], 0
    %s10 = scalar_lea.sflag [#allocation3], 1
    %11 = vsyncpa %s10, 0
    %12 = vsyncpa [#allocation4], 0
    %s13 = scalar_lea.sflag [#allocation4], 1
    %14 = vsyncpa %s13, 0
    %15 = vsyncpa [#allocation7], 0
    %s16 = scalar_lea.sflag [#allocation7], 1
    %17 = vsyncpa %s16, 0
    loop: start=0, step=1, limit=4
    $region2: #{tpu_custom_call.1} parent=1 // loop_pre_header
      _
    $region3: #{tpu_custom_call.1} parent=1 // loop_header
      %s19 = sphi 0, %s23
      %p20 = scmp.ge.s32.totalorder %s19, 4
      %s29 = sphi 0, %s31
      %s32 = sphi 0, %s29
      %s33 = sphi 0, %s32
      %s49 = sphi 0, %s33
      %s55 = sphi 0, %s57
      %s58 = sphi 0, %s55
      %s59 = sphi 0, %s58
      %s75 = sphi 0, %s59
      %s81 = sphi 0, %s83
      %s84 = sphi 0, %s81
      %s85 = sphi 0, %s84
      %s101 = sphi 0, %s85
      %s107 = sphi 0, %s109
      %s110 = sphi 0, %s107
      %s111 = sphi 0, %s110
      %s127 = sphi 0, %s111
    $region4: #{tpu_custom_call.1} parent=1 // loop_header_branch
      %22 = sbr.rel (%p20) target = $region8
    $region5: #{tpu_custom_call.1} parent=1 // loop_body
      %s24 = ssub.s32 %s19, 1
      %s25 = ssub.s32 %s19, 2
      %s26 = sadd.s32 %s19, 1
      %s27 = ssub.s32 %s19, %s26
      %p28 = scmp.eq.s32.totalorder %s27, 0
      %s30 = sadd.s32 %s29, 1
      %s31 = scalar_select %p28, %s29, %s30
      %p34 = pneg %p28
      %p35 = scmp.eq.s32.totalorder %s19, 1
      %p36 = por %p34, %p35
      %p37 = scmp.ne.s32.totalorder %s29, %s32
      %p38 = scmp.eq.s32.totalorder %s19, 0
      %p39 = por %p37, %p38
      %p40 = scmp.ne.s32.totalorder %s29, %s32
      %p41 = scmp.eq.s32.totalorder %s24, 1
      %p42 = por %p40, %p41
      %p43 = scmp.ne.s32.totalorder %s32, %s33
      %p44 = scmp.eq.s32.totalorder %s24, 0
      %p45 = por %p43, %p44
      %p46 = scmp.ne.s32.totalorder %s32, %s33
      %p47 = scmp.eq.s32.totalorder %s25, 1
      %p48 = por %p46, %p47
      %p50 = scmp.ne.s32.totalorder %s33, %s49
      %p51 = scmp.eq.s32.totalorder %s25, 0
      %p52 = por %p50, %p51
      %s53 = ssub.s32 %s19, %s26
      %p54 = scmp.eq.s32.totalorder %s53, 0
      %s56 = sadd.s32 %s55, 1
      %s57 = scalar_select %p54, %s55, %s56
      %p60 = pneg %p54
      %p61 = scmp.eq.s32.totalorder %s19, 1
      %p62 = por %p60, %p61
      %p63 = scmp.ne.s32.totalorder %s55, %s58
      %p64 = scmp.eq.s32.totalorder %s19, 0
      %p65 = por %p63, %p64
      %p66 = scmp.ne.s32.totalorder %s55, %s58
      %p67 = scmp.eq.s32.totalorder %s24, 1
      %p68 = por %p66, %p67
      %p69 = scmp.ne.s32.totalorder %s58, %s59
      %p70 = scmp.eq.s32.totalorder %s24, 0
      %p71 = por %p69, %p70
      %p72 = scmp.ne.s32.totalorder %s58, %s59
      %p73 = scmp.eq.s32.totalorder %s25, 1
      %p74 = por %p72, %p73
      %p76 = scmp.ne.s32.totalorder %s59, %s75
      %p77 = scmp.eq.s32.totalorder %s25, 0
      %p78 = por %p76, %p77
      %s79 = ssub.s32 %s19, %s26
      %p80 = scmp.eq.s32.totalorder %s79, 0
      %s82 = sadd.s32 %s81, 1
      %s83 = scalar_select %p80, %s81, %s82
      %p86 = pneg %p80
      %p87 = scmp.eq.s32.totalorder %s19, 1
      %p88 = por %p86, %p87
      %p89 = scmp.ne.s32.totalorder %s81, %s84
      %p90 = scmp.eq.s32.totalorder %s19, 0
      %p91 = por %p89, %p90
      %p92 = scmp.ne.s32.totalorder %s81, %s84
      %p93 = scmp.eq.s32.totalorder %s24, 1
      %p94 = por %p92, %p93
      %p95 = scmp.ne.s32.totalorder %s84, %s85
      %p96 = scmp.eq.s32.totalorder %s24, 0
      %p97 = por %p95, %p96
      %p98 = scmp.ne.s32.totalorder %s84, %s85
      %p99 = scmp.eq.s32.totalorder %s25, 1
      %p100 = por %p98, %p99
      %p102 = scmp.ne.s32.totalorder %s85, %s101
      %p103 = scmp.eq.s32.totalorder %s25, 0
      %p104 = por %p102, %p103
      %s105 = ssub.s32 %s19, %s26
      %p106 = scmp.eq.s32.totalorder %s105, 0
      %s108 = sadd.s32 %s107, 1
      %s109 = scalar_select %p106, %s107, %s108
      %p112 = pneg %p106
      %p113 = scmp.eq.s32.totalorder %s19, 1
      %p114 = por %p112, %p113
      %p115 = scmp.ne.s32.totalorder %s107, %s110
      %p116 = scmp.eq.s32.totalorder %s19, 0
      %p117 = por %p115, %p116
      %p118 = scmp.ne.s32.totalorder %s107, %s110
      %p119 = scmp.eq.s32.totalorder %s24, 1
      %p120 = por %p118, %p119
      %p121 = scmp.ne.s32.totalorder %s110, %s111
      %p122 = scmp.eq.s32.totalorder %s24, 0
      %p123 = por %p121, %p122
      %p124 = scmp.ne.s32.totalorder %s110, %s111
      %p125 = scmp.eq.s32.totalorder %s25, 1
      %p126 = por %p124, %p125
      %p128 = scmp.ne.s32.totalorder %s111, %s127
      %p129 = scmp.eq.s32.totalorder %s25, 0
      %p130 = por %p128, %p129
      %p131 = scmp.le.s32.totalorder 1, %s19
      %p132 = scmp.lt.s32.totalorder %s19, 3
      %p133 = pnand %p131, %p132
      %p134 = pneg %p133
      // Predicated region
      $region9: #{tpu_custom_call.1} parent=5 // pred_check
        _
      $region10: #{tpu_custom_call.1} parent=5 // pred_check_branch
        %136 = sbr.rel (%p133) target = $region12
      $region11: #{tpu_custom_call.1} parent=5 // pred_region
        %s137 = ssub.s32 %s19, 1
      $region12: #{tpu_custom_call.1} parent=5 // pred_fallthru
        _
      %p138 = scmp.lt.s32.totalorder %s19, 2
      // Predicated region
      $region13: #{tpu_custom_call.1} parent=5 // pred_check
        %p139 = pneg %p138
      $region14: #{tpu_custom_call.1} parent=5 // pred_check_branch
        %141 = sbr.rel (%p139) target = $region16
      $region15: #{tpu_custom_call.1} parent=5 // pred_region
        // Predicated region
        $region17: #{tpu_custom_call.1} parent=15 // pred_check
          %p142 = pneg %p39
        $region18: #{tpu_custom_call.1} parent=15 // pred_check_branch
          %144 = sbr.rel (%p142) target = $region20
        $region19: #{tpu_custom_call.1} parent=15 // pred_region
          %s145 = sand.u32 %s29, 1
          %s146 = scalar_lea.sflag [#allocation3], %s145
          %s147 = sand.u32 %s29, 1
          %s148 = smul.addr %s147, 16
          %s149 = scalar_lea.vmem [#allocation2], %s148
          %s151 = ssub.s32 256, 256
          %152 = vsyncadd %s146, %s151
          %s153 = smul.addr %s19, 2
          %s154 = smul.addr %s153, 128
          %s155 = scalar_lea.hbm %s0, %s154
          %s156 = sshll.u32 %s149, 4
          %s157 = int_to_ptr.vmem [resolvable:$true] %s156
          %162 = dma.hbm_to_vmem [thread:$0]  %s155, 256, %s157, %s146, 128, 128, 8
        $region20: #{tpu_custom_call.1} parent=15 // pred_fallthru
          _
        // Predicated region
        $region21: #{tpu_custom_call.1} parent=15 // pred_check
          %p163 = pneg %p65
        $region22: #{tpu_custom_call.1} parent=15 // pred_check_branch
          %165 = sbr.rel (%p163) target = $region24
        $region23: #{tpu_custom_call.1} parent=15 // pred_region
          %p166 = scmp.lt.s32.totalorder %s19, 1
          %s167 = scalar_select %p166, %s19, 1
          %s168 = scalar_lea.vmem %s1, %s167
        $region24: #{tpu_custom_call.1} parent=15 // pred_fallthru
          _
      $region16: #{tpu_custom_call.1} parent=5 // pred_fallthru
        _
      %p169 = scmp.le.s32.totalorder 1, %s19
      %p170 = scmp.lt.s32.totalorder %s19, 3
      %p171 = pnand %p169, %p170
      %p172 = pneg %p171
      // Predicated region
      $region25: #{tpu_custom_call.1} parent=5 // pred_check
        _
      $region26: #{tpu_custom_call.1} parent=5 // pred_check_branch
        %174 = sbr.rel (%p171) target = $region28
      $region27: #{tpu_custom_call.1} parent=5 // pred_region
        %s175 = ssub.s32 %s19, 1
        %s176 = sand.u32 %s32, 1
        %s177 = scalar_lea.sflag [#allocation3], %s176
        %s178 = sand.u32 %s32, 1
        %s179 = smul.addr %s178, 16
        %s180 = scalar_lea.vmem [#allocation2], %s179
        // Predicated region
        $region29: #{tpu_custom_call.1} parent=27 // pred_check
          %p181 = pneg %p45
        $region30: #{tpu_custom_call.1} parent=27 // pred_check_branch
          %183 = sbr.rel (%p181) target = $region32
        $region31: #{tpu_custom_call.1} parent=27 // pred_region
          %184 = dma.done %s177, 256
        $region32: #{tpu_custom_call.1} parent=27 // pred_fallthru
          _
        %s185 = sand.u32 %s32, 1
        %s186 = scalar_lea.sflag [#allocation3], %s185
        %s187 = sand.u32 %s32, 1
        %s188 = smul.addr %s187, 16
        %s189 = scalar_lea.vmem [#allocation2], %s188
        %p190 = pneg %p45
        %p191 = pneg %p42
        %p192 = scmp.lt.s32.totalorder %s24, 1
        %s193 = scalar_select %p192, %s24, 1
        %s194 = scalar_lea.vmem %s1, %s193
        %p195 = pneg %p71
        %p196 = pneg %p68
        %p197 = pneg %p97
        %p198 = pneg %p94
        %s199 = sand.u32 %s84, 1
        %s200 = scalar_lea.sflag [#allocation4], %s199
        %s201 = sand.u32 %s84, 1
        %s202 = smul.addr %s201, 16
        %s203 = scalar_lea.vmem [#allocation5], %s202
        %p204 = pneg %p123
        %p205 = pneg %p120
        %s206 = sand.u32 %s110, 1
        %s207 = scalar_lea.sflag [#allocation7], %s206
        %s208 = sand.u32 %s110, 1
        %s209 = smul.addr %s208, 16
        %s210 = scalar_lea.vmem [#allocation6], %s209
        %p211 = scmp.lt.s32.totalorder %s24, 1
        %s212 = scalar_select %p211, %s24, 1
        %s213 = scalar_lea.vmem %s1, %s212
        %v215 = vld [vmem:[%s180] sm:$0xff]
        %v216 = vld [vmem:[%s180 + $0x8] sm:$0xff]
        %v217 = vpack.c.bf16 %v216, %v215
        %v218 = vld [vmem:[%s213] sm:$0x1]
        %vm219 = vcmask 261120
        %v221 = vsel %vm219, %v217, 0
        %223 = vmatprep.subr.bf16.mxu0 0
        %224 = vmatpush1.bf16.xpose.msra.mxu0 %v221
        %225 = vmatprep.subr.bf16.mxu0 0
        %226 = vmatpush1.bf16.xpose.msra.mxu0 0
        %227 = vmatprep.subr.bf16.mxu0 0
        %228 = vmatpush1.bf16.xpose.msra.mxu0 0
        %229 = vmatprep.subr.bf16.mxu0 0
        %230 = vmatpush1.bf16.xpose.msra.mxu0 0
        %231 = vmatprep.subr.bf16.mxu0 0
        %232 = vmatpush1.bf16.xpose.msra.mxu0 0
        %233 = vmatprep.subr.bf16.mxu0 0
        %234 = vmatpush1.bf16.xpose.msra.mxu0 0
        %235 = vmatprep.subr.bf16.mxu0 0
        %236 = vmatpush1.bf16.xpose.msra.mxu0 0
        %237 = vmatprep.subr.bf16.mxu0 0
        %238 = vmatpush1.bf16.xpose.msra.mxu0 0
        %239 = vmatprep.subr.bf16.mxu0 0
        %240 = vmatpush1.bf16.xpose.msra.mxu0 0
        %241 = vmatprep.subr.bf16.mxu0 0
        %242 = vmatpush1.bf16.xpose.msra.mxu0 0
        %243 = vmatprep.subr.bf16.mxu0 0
        %244 = vmatpush1.bf16.xpose.msra.mxu0 0
        %245 = vmatprep.subr.bf16.mxu0 0
        %246 = vmatpush1.bf16.xpose.msra.mxu0 0
        %247 = vmatprep.subr.bf16.mxu0 0
        %248 = vmatpush1.bf16.xpose.msra.mxu0 0
        %249 = vmatprep.subr.bf16.mxu0 0
        %250 = vmatpush1.bf16.xpose.msra.mxu0 0
        %251 = vmatprep.subr.bf16.mxu0 0
        %252 = vmatpush1.bf16.xpose.msra.mxu0 0
        %253 = vmatprep.subr.bf16.mxu0 0
        %254 = vmatpush1.bf16.xpose.msra.mxu0 0
        %255 = vmatprep.mubr.bf16.mxu0 0
        %256 = vmatmul.mubr.bf16.gmra.mrb[0].mxu0 %v221
        %v257 = vpop.f32.mrb[0].mxu0
        %v258 = vadd.f32 0.0, %v257
        %v259 = vpop.f32.mrb[0].mxu0
        %v260 = vpop.f32.mrb[0].mxu0
        %v261 = vadd.f32 0.0, %v260
        %v262 = vpop.f32.mrb[0].mxu0
        %263 = vdwg.mxu0
        %v264 = vlaneseq
        %v265 = vshrl.u32 %v264, 7
        %v266 = vadd.s32 %v265, 8
        %v267 = vlaneseq
        %v268 = vand.u32 %v267, 127
        %vm269 = vcmp.eq.s32.totalorder %v265, %v268
        %vm270 = vcmp.eq.s32.totalorder %v266, %v268
        %v271 = vsel %vm269, 0.0, %v258
        %v272 = vsel %vm270, 0.0, %v261
        %v274 = vlaneseq
        %v275 = vshrl.u32 %v274, 7
        %v276 = vsub.s32 0, %v275
        %v277 = vrot.slane %v218, %v276
        %v279 = vmul.f32 %v271, %v277
        %v280 = vmul.f32 %v272, %v277
        %vm281 = vcmask 130048
        %v282 = vsel %vm281, %v279, -inf
        %283 = vmax.xlane.f32.xlu0 %v282
        %v284 = vpop.xlane.xlu0 %283
        %v285 = vsel %vm281, %v280, -inf
        %286 = vmax.xlane.f32.xlu0 %v285
        %v287 = vpop.xlane.xlu0 %286
        %v288 = vsub.f32 %v279, %v284
        %v289 = vsub.f32 %v280, %v287
        %v290 = vmul.f32 %v288, 1.442695
        %v291 = vpow.pop %v290
        %v292 = vmul.f32 %v289, 1.442695
        %v293 = vpow.pop %v292
        %v294 = vmul.f32 %v291, %v277
        %v295 = vmul.f32 %v293, %v277
        %v296 = vsel %vm281, %v294, 0.0
        %297 = vadd.xlane.f32.xlu0 %v296
        %v298 = vpop.xlane.xlu0 %297
        %v299 = vsel %vm281, %v295, 0.0
        %300 = vadd.xlane.f32.xlu0 %v299
        %v301 = vpop.xlane.xlu0 %300
        %v302 = vadd.f32 %v298, 1e-06
        %v303 = vadd.f32 %v301, 1e-06
        %v304 = vrcp.pop %v302
        %v305 = vrcp.pop %v303
        %v306 = vmul.f32 %v294, %v304
        %v307 = vmul.f32 %v295, %v305
        %308 = vst.msk [vmem:[%s210] sm:$0xff] %vm281, %v306
        %309 = vst.msk [vmem:[%s210 + $0x8] sm:$0xff] %vm281, %v307
        %v310 = vpack.c.bf16 %v307, %v306
        %v312 = vsel %vm281, %v310, 0
        %314 = vmatprep.subr.bf16.mxu0 0
        %315 = vmatpush1.bf16.msra.mxu0 %v217
        %316 = vmatprep.subr.bf16.mxu0 0
        %317 = vmatpush1.bf16.msra.mxu0 0
        %318 = vmatprep.subr.bf16.mxu0 0
        %319 = vmatpush1.bf16.msra.mxu0 0
        %320 = vmatprep.subr.bf16.mxu0 0
        %321 = vmatpush1.bf16.msra.mxu0 0
        %322 = vmatprep.subr.bf16.mxu0 0
        %323 = vmatpush1.bf16.msra.mxu0 0
        %324 = vmatprep.subr.bf16.mxu0 0
        %325 = vmatpush1.bf16.msra.mxu0 0
        %326 = vmatprep.subr.bf16.mxu0 0
        %327 = vmatpush1.bf16.msra.mxu0 0
        %328 = vmatprep.subr.bf16.mxu0 0
        %329 = vmatpush1.bf16.msra.mxu0 0
        %330 = vmatprep.subr.bf16.mxu0 0
        %331 = vmatpush1.bf16.msra.mxu0 0
        %332 = vmatprep.subr.bf16.mxu0 0
        %333 = vmatpush1.bf16.msra.mxu0 0
        %334 = vmatprep.subr.bf16.mxu0 0
        %335 = vmatpush1.bf16.msra.mxu0 0
        %336 = vmatprep.subr.bf16.mxu0 0
        %337 = vmatpush1.bf16.msra.mxu0 0
        %338 = vmatprep.subr.bf16.mxu0 0
        %339 = vmatpush1.bf16.msra.mxu0 0
        %340 = vmatprep.subr.bf16.mxu0 0
        %341 = vmatpush1.bf16.msra.mxu0 0
        %342 = vmatprep.subr.bf16.mxu0 0
        %343 = vmatpush1.bf16.msra.mxu0 0
        %344 = vmatprep.subr.bf16.mxu0 0
        %345 = vmatpush1.bf16.msra.mxu0 0
        %346 = vmatprep.mubr.bf16.mxu0 0
        %347 = vmatmul.mubr.bf16.gmra.mrb[0].mxu0 %v312
        %v348 = vpop.f32.mrb[0].mxu0
        %v349 = vadd.f32 0.0, %v348
        %v350 = vpop.f32.mrb[0].mxu0
        %v351 = vpop.f32.mrb[0].mxu0
        %v352 = vadd.f32 0.0, %v351
        %v353 = vpop.f32.mrb[0].mxu0
        %354 = vdwg.mxu0
        %355 = vst.msk [vmem:[%s203] sm:$0xff] %vm219, %v349
        %356 = vst.msk [vmem:[%s203 + $0x8] sm:$0xff] %vm219, %v352
        %s357 = sand.u32 %s84, 1
        %s358 = scalar_lea.sflag [#allocation4], %s357
        %s359 = sand.u32 %s84, 1
        %s360 = smul.addr %s359, 16
        %s361 = scalar_lea.vmem [#allocation5], %s360
        %s362 = sand.u32 %s110, 1
        %s363 = scalar_lea.sflag [#allocation7], %s362
        %s364 = sand.u32 %s110, 1
        %s365 = smul.addr %s364, 16
        %s366 = scalar_lea.vmem [#allocation6], %s365
        // Predicated region
        $region33: #{tpu_custom_call.1} parent=27 // pred_check
          %p367 = pneg %p94
        $region34: #{tpu_custom_call.1} parent=27 // pred_check_branch
          %369 = sbr.rel (%p367) target = $region36
        $region35: #{tpu_custom_call.1} parent=27 // pred_region
          %s371 = ssub.s32 256, 256
          %372 = vsyncadd %s358, %s371
          %s373 = smul.addr %s24, 2
          %s374 = smul.addr %s373, 128
          %s375 = scalar_lea.hbm %s2, %s374
          %s376 = sshll.u32 %s361, 4
          %s377 = int_to_ptr.vmem [resolvable:$true] %s376
          %382 = dma.vmem_to_hbm [thread:$0]  %s377, 256, %s375, %s358, 128, 128, 8
        $region36: #{tpu_custom_call.1} parent=27 // pred_fallthru
          _
        // Predicated region
        $region37: #{tpu_custom_call.1} parent=27 // pred_check
          %p383 = pneg %p120
        $region38: #{tpu_custom_call.1} parent=27 // pred_check_branch
          %385 = sbr.rel (%p383) target = $region40
        $region39: #{tpu_custom_call.1} parent=27 // pred_region
          %s387 = ssub.s32 256, 256
          %388 = vsyncadd %s363, %s387
          %s389 = smul.addr %s24, 2
          %s390 = smul.addr %s389, 128
          %s391 = scalar_lea.hbm %s3, %s390
          %s392 = sshll.u32 %s366, 4
          %s393 = int_to_ptr.vmem [resolvable:$true] %s392
          %398 = dma.vmem_to_hbm [thread:$0]  %s393, 256, %s391, %s363, 128, 128, 8
        $region40: #{tpu_custom_call.1} parent=27 // pred_fallthru
          _
      $region28: #{tpu_custom_call.1} parent=5 // pred_fallthru
        _
      %p399 = scmp.le.s32.totalorder 2, %s19
      // Predicated region
      $region41: #{tpu_custom_call.1} parent=5 // pred_check
        %p400 = pneg %p399
      $region42: #{tpu_custom_call.1} parent=5 // pred_check_branch
        %402 = sbr.rel (%p400) target = $region44
      $region43: #{tpu_custom_call.1} parent=5 // pred_region
        %s403 = ssub.s32 %s19, 2
        // Predicated region
        $region45: #{tpu_custom_call.1} parent=43 // pred_check
          %p404 = pneg %p100
        $region46: #{tpu_custom_call.1} parent=43 // pred_check_branch
          %406 = sbr.rel (%p404) target = $region48
        $region47: #{tpu_custom_call.1} parent=43 // pred_region
          %s407 = sand.u32 %s85, 1
          %s408 = scalar_lea.sflag [#allocation4], %s407
          %s409 = sand.u32 %s85, 1
          %s410 = smul.addr %s409, 16
          %s411 = scalar_lea.vmem [#allocation5], %s410
          %412 = dma.done %s408, 256
        $region48: #{tpu_custom_call.1} parent=43 // pred_fallthru
          _
        // Predicated region
        $region49: #{tpu_custom_call.1} parent=43 // pred_check
          %p413 = pneg %p126
        $region50: #{tpu_custom_call.1} parent=43 // pred_check_branch
          %415 = sbr.rel (%p413) target = $region52
        $region51: #{tpu_custom_call.1} parent=43 // pred_region
          %s416 = sand.u32 %s111, 1
          %s417 = scalar_lea.sflag [#allocation7], %s416
          %s418 = sand.u32 %s111, 1
          %s419 = smul.addr %s418, 16
          %s420 = scalar_lea.vmem [#allocation6], %s419
          %421 = dma.done %s417, 256
        $region52: #{tpu_custom_call.1} parent=43 // pred_fallthru
          _
      $region44: #{tpu_custom_call.1} parent=5 // pred_fallthru
        _
    $region6: #{tpu_custom_call.1} parent=1 // loop_footer
      %s23 = sadd.s32 1, %s19
    $region7: #{tpu_custom_call.1} parent=1 // loop_footer_branch
      %18 = sbr.rel target = $region3
    $region8: #{tpu_custom_call.1} parent=1 // loop_exit
      _
    %422 = vsyncpa [#allocation3], 1
    %s423 = scalar_lea.sflag [#allocation3], 1
    %424 = vsyncpa %s423, 1
    %425 = vsyncpa [#allocation4], 1
    %s426 = scalar_lea.sflag [#allocation4], 1
    %427 = vsyncpa %s426, 1
    %428 = vsyncpa [#allocation7], 1
    %s429 = scalar_lea.sflag [#allocation7], 1
    %430 = vsyncpa %s429, 1

</llo_original>
